<compile_context>
chip_gen: v7x
topology: tpu7x:2x2x1
jax: 0.10.0
libtpu: 0.0.40
codegen_flags: <defaults>
</compile_context>

<pallas_src>
import jax
import jax.numpy as jnp
from jax import lax
from jax.experimental import pallas as pl
from jax.experimental.pallas import tpu as pltpu

_EPS = 1e-5  # nn.BatchNorm2d default


# ----------------------------------------------------------------------------- kernels
def _stats_kernel(x_ref, sum_ref, sumsq_ref):
    """Per-row (n*c) sum / sum-of-squares accumulated over HW tiles.

    x_ref:     (row_blk, hw_tile)  rows (flattened N*C) on sublanes, spatial on lanes
    sum_ref:   (row_blk, 1)        resident accumulator across the HW grid axis
    sumsq_ref: (row_blk, 1)
    """
    @pl.when(pl.program_id(1) == 0)
    def _():
        sum_ref[...] = jnp.zeros_like(sum_ref)
        sumsq_ref[...] = jnp.zeros_like(sumsq_ref)

    x = x_ref[...]
    # One traversal of the tile: lane (XLU) reduce; VPU does the single x*x.
    sum_ref[...] += jnp.sum(x, axis=1, keepdims=True)
    sumsq_ref[...] += jnp.sum(x * x, axis=1, keepdims=True)


def _apply_kernel(x_ref, scale_ref, shift_ref, o_ref):
    """out = x * scale + shift; scale/shift are (row_blk, 1), broadcast along lanes."""
    o_ref[...] = x_ref[...] * scale_ref[...] + shift_ref[...]


# ----------------------------------------------------------------------------- tiling
def _largest_divisor_leq(total, cap):
    cap = max(1, min(total, cap))
    for d in range(cap, 0, -1):
        if total % d == 0:
            return d
    return 1


def _choose_tiles(n_rows, hw, max_block_bytes):
    """(row_blk, hw_tile): last two block dims are (mult of 8, mult of 128) or full."""
    row_unit = 8 if n_rows % 8 == 0 else n_rows
    hw_unit = 128 if hw % 128 == 0 else hw
    # Lane tile first (lane-dense loads/stores), then fill the budget with rows.
    hw_cap = max(1, max_block_bytes // (row_unit * hw_unit * 4))
    hw_tile = hw_unit * _largest_divisor_leq(hw // hw_unit, hw_cap)
    row_cap = max(1, max_block_bytes // (row_unit * hw_tile * 4))
    row_blk = row_unit * _largest_divisor_leq(n_rows // row_unit, row_cap)
    return row_blk, hw_tile


# ----------------------------------------------------------------------------- wrapper
def cond_norm_2d(x_nchw, cond, make_weight_w, make_weight_b, make_bias_w,
                 make_bias_b, *, max_block_bytes=4 * 2**20):
    """CondNormNd(n_dim=2, norm_type='batch') forward.

    x_nchw: (N, C, H, W) f32; cond: (N, K) f32; linear params shaped as in nn.Linear.
    """
    x_nchw = x_nchw.astype(jnp.float32)
    cond = cond.astype(jnp.float32)
    N, C, H, W = x_nchw.shape
    HW = H * W
    NC = N * C
    # Free view of contiguous NCHW (no HBM traffic): rows->sublanes, spatial->lanes.
    x = x_nchw.reshape(NC, HW)

    row_blk, hw_tile = _choose_tiles(NC, HW, max_block_bytes)
    row_grid = NC // row_blk
    hw_grid = HW // hw_tile
    block_bytes = row_blk * hw_tile * 4
    # ~2x in + 2x out double buffers + coefficients + headroom, clamped to [16, 32] MiB
    # (portable across v5e / v6e / v7x scoped-VMEM defaults).
    vmem_limit = int(min(32 * 2**20, max(16 * 2**20, 8 * block_bytes)))

    x_spec = pl.BlockSpec((row_blk, hw_tile), lambda ri, hi: (ri, hi))
    coef_spec = pl.BlockSpec((row_blk, 1), lambda ri, hi: (ri, 0))

    # ---- pass 1: per-row sum / sumsq (one HBM read of x) ----
    row_sum, row_sumsq = pl.pallas_call(
        _stats_kernel,
        out_shape=(jax.ShapeDtypeStruct((NC, 1), jnp.float32),
                   jax.ShapeDtypeStruct((NC, 1), jnp.float32)),
        grid=(row_grid, hw_grid),
        in_specs=[x_spec],
        out_specs=(coef_spec, coef_spec),
        compiler_params=pltpu.CompilerParams(
            dimension_semantics=("parallel", "arbitrary"),
            vmem_limit_bytes=vmem_limit),
        cost_estimate=pl.CostEstimate(flops=3 * x.size, transcendentals=0,
                                      bytes_accessed=x.size * 4 + 2 * NC * 4),
    )(x)

    # ---- tiny XLA epilogue (hoisted out of the per-tile path): stats + FiLM coeffs ----
    inv_count = 1.0 / (N * HW)
    mean = jnp.sum(row_sum.reshape(N, C), axis=0) * inv_count               # (C,)
    e_x2 = jnp.sum(row_sumsq.reshape(N, C), axis=0) * inv_count             # (C,)
    var = jnp.maximum(e_x2 - mean * mean, 0.0)                              # biased var
    inv_std = lax.rsqrt(var + _EPS)                                         # (C,)
    film_w = cond @ make_weight_w.T + make_weight_b                         # (N, C)
    film_b = cond @ make_bias_w.T + make_bias_b                             # (N, C)
    scale = (1.0 + film_w) * inv_std[None, :]                               # (N, C)
    shift = film_b - scale * mean[None, :]                                  # (N, C)
    scale = scale.reshape(NC, 1)
    shift = shift.reshape(NC, 1)

    # ---- pass 2: out = x * scale + shift (one read + one write of x) ----
    out = pl.pallas_call(
        _apply_kernel,
        out_shape=jax.ShapeDtypeStruct((NC, HW), jnp.float32),
        grid=(row_grid, hw_grid),
        in_specs=[x_spec, coef_spec, coef_spec],
        out_specs=x_spec,
        compiler_params=pltpu.CompilerParams(
            dimension_semantics=("parallel", "parallel"),
            vmem_limit_bytes=vmem_limit),
        cost_estimate=pl.CostEstimate(flops=2 * x.size, transcendentals=0,
                                      bytes_accessed=2 * x.size * 4 + 2 * NC * 4),
    )(x, scale, shift)

    return out.reshape(N, C, H, W)


# ----------------------------------------------------------------------------- reference
def _reference(x, cond, ww, wb, bw, bb):
    """Pure-JAX reference mirroring the PyTorch forward (training-mode BatchNorm2d)."""
    film_w = cond @ ww.T + wb                                               # (N, C)
    film_b = cond @ bw.T + bb                                               # (N, C)
    mean = jnp.mean(x, axis=(0, 2, 3), keepdims=True)
    var = jnp.mean((x - mean) ** 2, axis=(0, 2, 3), keepdims=True)
    xhat = (x - mean) / jnp.sqrt(var + _EPS)
    return (1.0 + film_w)[:, :, None, None] * xhat + film_b[:, :, None, None]


if __name__ == "__main__":
    base_key = jax.random.PRNGKey(0)

    def run_case(N, C, H, W, K, max_block_bytes=4 * 2**20, tag=0):
        kx, kc, k1, k2, k3, k4 = jax.random.split(jax.random.fold_in(base_key, tag), 6)
        x = jax.random.normal(kx, (N, C, H, W), dtype=jnp.float32)
        cond = jax.random.normal(kc, (N, K), dtype=jnp.float32)
        # Shapes as in nn.Linear(cond_channels=K, num_features=C).
        ww = 0.1 * jax.random.normal(k1, (C, K), dtype=jnp.float32)
        wb = 0.1 * jax.random.normal(k2, (C,), dtype=jnp.float32)
        bw = 0.1 * jax.random.normal(k3, (C, K), dtype=jnp.float32)
        bb = 0.1 * jax.random.normal(k4, (C,), dtype=jnp.float32)

        out = cond_norm_2d(x, cond, ww, wb, bw, bb, max_block_bytes=max_block_bytes)
        out = jax.block_until_ready(out)

        ref = _reference(x, cond, ww, wb, bw, bb)
        assert out.shape == (N, C, H, W)
        err = float(jnp.max(jnp.abs(out - ref)))
        assert jnp.allclose(out, ref, atol=1e-4, rtol=1e-4), err

    # Primary toy case (matches the module defaults): single-tile grid.
    run_case(N=2, C=4, H=16, W=16, K=8, tag=1)
    # Larger case with a deliberately small block budget so BOTH grid axes have >1 step
    # (exercises across-grid stats accumulation and the pipelined apply pass).
    run_case(N=16, C=8, H=32, W=32, K=8, max_block_bytes=16 * 1024, tag=2)
    # Ragged case: N*C not a multiple of 8 and H*W not a multiple of 128
    # (exercises the full-extent block fallback).
    run_case(N=3, C=5, H=20, W=10, K=8, tag=3)

    print("KERNEL_OK")
</pallas_src>

<mosaic_0001>
module attributes {stable_mosaic.version = 11 : i64} {
  func.func @_stats_kernel(%arg0: i32, %arg1: i32, %arg2: memref<8x256xf32, #tpu.memory_space<vmem>>, %arg3: memref<8x1xf32, #tpu.memory_space<vmem>>, %arg4: memref<8x1xf32, #tpu.memory_space<vmem>>) attributes {dimension_semantics = [#tpu.dimension_semantics<parallel>, #tpu.dimension_semantics<arbitrary>], iteration_bounds = array<i64: 1, 1>, scalar_prefetch = 0 : i64, scratch_operands = 0 : i64, tpu.core_type = #tpu.core_type<tc>, window_params = [{transform_indices = @transform_0, window_bounds = array<i64: 8, 256>}, {transform_indices = @transform_1, window_bounds = array<i64: 8, 1>}, {transform_indices = @transform_2, window_bounds = array<i64: 8, 1>}]} {
    %c0_i32 = arith.constant 0 : i32
    %0 = arith.cmpi eq, %arg1, %c0_i32 : i32
    %1 = arith.extui %0 : i1 to i32
    %c0_i32_0 = arith.constant 0 : i32
    %2 = arith.cmpi ne, %1, %c0_i32_0 : i32
    scf.if %2 {
      %cst_11 = arith.constant 0.000000e+00 : f32
      %15 = vector.broadcast %cst_11 : f32 to vector<8x1xf32>
      %c0_12 = arith.constant 0 : index
      %c0_13 = arith.constant 0 : index
      %16 = vector.load %arg3[%c0_12, %c0_13] : memref<8x1xf32, #tpu.memory_space<vmem>>, vector<8x1xf32>
      tpu.vector_store %arg3[%c0_12, %c0_13], %15 {strides = array<i32>} : memref<8x1xf32, #tpu.memory_space<vmem>>, vector<8x1xf32>,
      %cst_14 = arith.constant 0.000000e+00 : f32
      %17 = vector.broadcast %cst_14 : f32 to vector<8x1xf32>
      %c0_15 = arith.constant 0 : index
      %c0_16 = arith.constant 0 : index
      %18 = vector.load %arg4[%c0_15, %c0_16] : memref<8x1xf32, #tpu.memory_space<vmem>>, vector<8x1xf32>
      tpu.vector_store %arg4[%c0_15, %c0_16], %17 {strides = array<i32>} : memref<8x1xf32, #tpu.memory_space<vmem>>, vector<8x1xf32>,
    } else {
    }
    %c0 = arith.constant 0 : index
    %c0_1 = arith.constant 0 : index
    %3 = vector.load %arg2[%c0, %c0_1] : memref<8x256xf32, #tpu.memory_space<vmem>>, vector<8x256xf32>
    %c0_2 = arith.constant 0 : index
    %c0_3 = arith.constant 0 : index
    %4 = vector.load %arg3[%c0_2, %c0_3] : memref<8x1xf32, #tpu.memory_space<vmem>>, vector<8x1xf32>
    %cst = arith.constant dense<0.000000e+00> : vector<8xf32>
    %5 = vector.multi_reduction <add>, %3, %cst [1] : vector<8x256xf32> to vector<8xf32>
    %6 = vector.shape_cast %5 : vector<8xf32> to vector<8x1xf32>
    %7 = arith.addf %4, %6 : vector<8x1xf32>
    %c0_4 = arith.constant 0 : index
    %c0_5 = arith.constant 0 : index
    %8 = vector.load %arg3[%c0_4, %c0_5] : memref<8x1xf32, #tpu.memory_space<vmem>>, vector<8x1xf32>
    tpu.vector_store %arg3[%c0_4, %c0_5], %7 {strides = array<i32>} : memref<8x1xf32, #tpu.memory_space<vmem>>, vector<8x1xf32>,
    %c0_6 = arith.constant 0 : index
    %c0_7 = arith.constant 0 : index
    %9 = vector.load %arg4[%c0_6, %c0_7] : memref<8x1xf32, #tpu.memory_space<vmem>>, vector<8x1xf32>
    %10 = arith.mulf %3, %3 : vector<8x256xf32>
    %cst_8 = arith.constant dense<0.000000e+00> : vector<8xf32>
    %11 = vector.multi_reduction <add>, %10, %cst_8 [1] : vector<8x256xf32> to vector<8xf32>
    %12 = vector.shape_cast %11 : vector<8xf32> to vector<8x1xf32>
    %13 = arith.addf %9, %12 : vector<8x1xf32>
    %c0_9 = arith.constant 0 : index
    %c0_10 = arith.constant 0 : index
    %14 = vector.load %arg4[%c0_9, %c0_10] : memref<8x1xf32, #tpu.memory_space<vmem>>, vector<8x1xf32>
    tpu.vector_store %arg4[%c0_9, %c0_10], %13 {strides = array<i32>} : memref<8x1xf32, #tpu.memory_space<vmem>>, vector<8x1xf32>,
    return
  }
  func.func @transform_0(%arg0: i32, %arg1: i32) -> (i32, i32) {
    %c0_i32 = arith.constant 0 : i32
    return %arg0, %arg1 : i32, i32
  }
  func.func @transform_1(%arg0: i32, %arg1: i32) -> (i32, i32) {
    %c0_i32 = arith.constant 0 : i32
    %c0_i32_0 = arith.constant 0 : i32
    return %arg0, %c0_i32 : i32, i32
  }
  func.func @transform_2(%arg0: i32, %arg1: i32) -> (i32, i32) {
    %c0_i32 = arith.constant 0 : i32
    %c0_i32_0 = arith.constant 0 : i32
    return %arg0, %c0_i32 : i32, i32
  }
}

</mosaic_0001>

<llo_original>
// kernel: tpu_custom_call.1
$region0: #{tpu_custom_call.1}
  #allocation0 [shape = 'u32[]', space=smem, size = 0x4, offset = 0x4, fixed_abs, tag = 'smem constant byte address 0x4 - core index']
  #allocation1 [shape = 'u32[144,128]{1,0:T(1,128)}', space=vmem, size = 0x12000, scoped, tag = 'internal scratch']
  %s0 = inlined_call_operand.hbm [shape: f32[8,256], index: 0, kind: input, shape index: {}]
  %s1 = inlined_call_operand.vmem [shape: f32[8,1], index: 1, kind: output, shape index: {0}]
  %s2 = inlined_call_operand.vmem [shape: f32[8,1], index: 2, kind: output, shape index: {1}]
  %3 = xla_tuple %s1, %s2
  %s4 = sld [smem:[#allocation0]]
  $region30: #{tpu_custom_call.1} parent=0
    _
  %s6 = ssub.s32 1, %s4
  %s7 = scalar_select 0, %s6, %s4
  $region1: #{tpu_custom_call.1} parent=0
    #allocation2 [shape = 'u8[8192]{0}', space=vmem, size = 0x2000, scoped, tag = 'input window, operand 0, single buffered']
    #allocation3 [shape = 's32[1]{0}', space=sflag, size = 0x4, scoped, tag = 'scoped memory for tpu_custom_call.1']
    %8 = vsyncpa [#allocation3], 0
    // Predicated region
    $region2: #{tpu_custom_call.1} parent=1 // pred_check
      _
    $region3: #{tpu_custom_call.1} parent=1 // pred_check_branch
      %10 = sbr.rel (0) target = $region5
    $region4: #{tpu_custom_call.1} parent=1 // pred_region
      %s12 = ssub.s32 256, 256
      %13 = vsyncadd [#allocation3], %s12
      %s15 = sshll.u32 [#allocation2], 4
      %s16 = int_to_ptr.vmem [resolvable:$true] %s15
      %18 = dma.hbm_to_vmem [thread:$0]  %s0, 256, %s16, [#allocation3]
    $region5: #{tpu_custom_call.1} parent=1 // pred_fallthru
      _
    // Predicated region
    $region6: #{tpu_custom_call.1} parent=1 // pred_check
      _
    $region7: #{tpu_custom_call.1} parent=1 // pred_check_branch
      %20 = sbr.rel (0) target = $region9
    $region8: #{tpu_custom_call.1} parent=1 // pred_region
      %21 = dma.done [#allocation3], 256
    $region9: #{tpu_custom_call.1} parent=1 // pred_fallthru
      _
    %p22 = scmp.eq.s32.totalorder 0, 0
    // Predicated region
    $region10: #{tpu_custom_call.1} parent=1 // pred_check
      %p23 = pneg %p22
    $region11: #{tpu_custom_call.1} parent=1 // pred_check_branch
      %25 = sbr.rel (%p23) target = $region13
    $region12: #{tpu_custom_call.1} parent=1 // pred_region
      %vm26 = vcmask 7168
      %27 = vst.msk [vmem:[%s1] sm:$0xff] %vm26, 0.0
      %28 = vst.msk [vmem:[%s2] sm:$0xff] %vm26, 0.0
    $region13: #{tpu_custom_call.1} parent=1 // pred_fallthru
      _
    %v29 = vld [vmem:[#allocation2] sm:$0xff]
    %v30 = vld [vmem:[#allocation2 + $0x8] sm:$0xff]
    %v31 = vld [vmem:[%s1] sm:$0xff]
    %v32 = vadd.f32 %v29, %v30
    %33 = vadd.xlane.f32.xlu0 %v32
    %v34 = vpop.xlane.xlu0 %33
    %v35 = vadd.f32 %v31, %v34
    %vm36 = vcmask 7168
    %37 = vst.msk [vmem:[%s1] sm:$0xff] %vm36, %v35
    %v38 = vld [vmem:[%s2] sm:$0xff]
    %v39 = vmul.f32 %v29, %v29
    %v40 = vmul.f32 %v30, %v30
    %v41 = vadd.f32 %v39, %v40
    %42 = vadd.xlane.f32.xlu0 %v41
    %v43 = vpop.xlane.xlu0 %42
    %v44 = vadd.f32 %v38, %v43
    %45 = vst.msk [vmem:[%s2] sm:$0xff] %vm36, %v44
    // Predicated region
    $region14: #{tpu_custom_call.1} parent=1 // pred_check
      _
    $region15: #{tpu_custom_call.1} parent=1 // pred_check_branch
      %47 = sbr.rel (0) target = $region17
    $region16: #{tpu_custom_call.1} parent=1 // pred_region
      _
    $region17: #{tpu_custom_call.1} parent=1 // pred_fallthru
      _
    // Predicated region
    $region18: #{tpu_custom_call.1} parent=1 // pred_check
      _
    $region19: #{tpu_custom_call.1} parent=1 // pred_check_branch
      %49 = sbr.rel (0) target = $region21
    $region20: #{tpu_custom_call.1} parent=1 // pred_region
      _
    $region21: #{tpu_custom_call.1} parent=1 // pred_fallthru
      _
    // Predicated region
    $region22: #{tpu_custom_call.1} parent=1 // pred_check
      _
    $region23: #{tpu_custom_call.1} parent=1 // pred_check_branch
      %51 = sbr.rel (0) target = $region25
    $region24: #{tpu_custom_call.1} parent=1 // pred_region
      _
    $region25: #{tpu_custom_call.1} parent=1 // pred_fallthru
      _
    // Predicated region
    $region26: #{tpu_custom_call.1} parent=1 // pred_check
      _
    $region27: #{tpu_custom_call.1} parent=1 // pred_check_branch
      %53 = sbr.rel (0) target = $region29
    $region28: #{tpu_custom_call.1} parent=1 // pred_region
      _
    $region29: #{tpu_custom_call.1} parent=1 // pred_fallthru
      _
    %54 = vsyncpa [#allocation3], 1

</llo_original>
